<compile_context>
chip_gen: v5e
topology: v5e:2x2
jax: 0.10.0
libtpu: 0.0.40
codegen_flags: <defaults>
</compile_context>

<pallas_src>
import functools

import numpy as np
import jax
import jax.numpy as jnp
from jax.experimental import pallas as pl
from jax.experimental.pallas import tpu as pltpu

EPS = 1e-5
INV_SQRT2 = 0.7071067811865476
NEG_INF = float(jnp.finfo(jnp.float32).min)


# ------------------------------ small helpers ------------------------------- #

_VMEM_LIMIT = None


def _vmem_limit_bytes():
    """Explicit scoped-VMEM budget with headroom under physical VMEM.

    ~100 MiB on 128 MiB parts (v5e/v6e), ~56 MiB on 64 MiB parts (v7x).
    """
    try:
        cap = int(pltpu.get_tpu_info().vmem_capacity_bytes)
    except Exception:  # pragma: no cover - conservative fallback
        cap = 64 << 20
    return int(min(cap - (8 << 20), 100 << 20))


def _compiler_params(dims):
    global _VMEM_LIMIT
    if _VMEM_LIMIT is None:
        _VMEM_LIMIT = _vmem_limit_bytes()
    return pltpu.CompilerParams(dimension_semantics=dims,
                                vmem_limit_bytes=_VMEM_LIMIT)


def _pick_tile(dim, pref, align):
    """Largest multiple of `align` that divides `dim` and is <= pref.

    Falls back to the full dimension when no aligned divisor exists.
    # TODO(synk): pad awkward (non-divisible) dims instead of a single full block.
    """
    if dim <= pref:
        return dim
    t = (pref // align) * align
    while t >= align:
        if dim % t == 0:
            return t
        t -= align
    return dim


# ----------------------------- Pallas kernels ------------------------------ #

def ln_linear_kernel(x_ref, g_ref, b_ref, w_ref, bias_ref, o_ref, xn_ref, *,
                     activation):
    """Fused LayerNorm + matmul (+ optional exact-erf GELU).

    Grid is (M tiles, N tiles).  LN of the (tm, K) input tile is computed once
    per M-tile (pl.when(j == 0)) into a bf16 VMEM scratch and reused across the
    N tiles; the matmul runs bf16 x bf16 -> fp32 on the MXU.
    """
    @pl.when(pl.program_id(1) == 0)
    def _():
        x = x_ref[...].astype(jnp.float32)
        mu = jnp.mean(x, axis=-1, keepdims=True)
        var = jnp.mean((x - mu) ** 2, axis=-1, keepdims=True)
        xn = (x - mu) * jax.lax.rsqrt(var + EPS) * g_ref[...] + b_ref[...]
        xn_ref[...] = xn.astype(jnp.bfloat16)

    y = jnp.dot(xn_ref[...], w_ref[...].astype(jnp.bfloat16),
                preferred_element_type=jnp.float32) + bias_ref[...]
    if activation == "gelu":  # exact (erf) GELU, matching nn.GELU default
        y = 0.5 * y * (1.0 + jax.lax.erf(y * INV_SQRT2))
    o_ref[...] = y.astype(o_ref.dtype)


def pallas_ln_linear(x2d, gamma, beta, w, bias, activation=None,
                     tm_pref=256, tn_pref=512):
    M, K = x2d.shape
    K2, N = w.shape
    assert K == K2
    tm = _pick_tile(M, tm_pref, 8)
    tn = _pick_tile(N, tn_pref, 128)
    assert M % tm == 0 and N % tn == 0

    kern = functools.partial(ln_linear_kernel, activation=activation)
    return pl.pallas_call(
        kern,
        out_shape=jax.ShapeDtypeStruct((M, N), x2d.dtype),
        grid=(M // tm, N // tn),
        in_specs=[pl.BlockSpec((tm, K), lambda i, j: (i, 0)),
                  pl.BlockSpec((1, K), lambda i, j: (0, 0)),
                  pl.BlockSpec((1, K), lambda i, j: (0, 0)),
                  pl.BlockSpec((K, tn), lambda i, j: (0, j)),
                  pl.BlockSpec((1, tn), lambda i, j: (0, j))],
        out_specs=pl.BlockSpec((tm, tn), lambda i, j: (i, j)),
        scratch_shapes=[pltpu.VMEM((tm, K), jnp.bfloat16)],
        compiler_params=_compiler_params(("parallel", "arbitrary")),
    )(x2d, gamma.reshape(1, K), beta.reshape(1, K), w, bias.reshape(1, N))


def linear_residual_kernel(y_ref, w_ref, b_ref, r_ref, o_ref, acc_ref):
    """out = residual + y @ W + b, K-tiled with fp32 VMEM accumulator (bf16 MXU)."""
    @pl.when(pl.program_id(2) == 0)
    def _():
        acc_ref[...] = jnp.zeros_like(acc_ref)

    acc_ref[...] += jnp.dot(y_ref[...].astype(jnp.bfloat16),
                            w_ref[...].astype(jnp.bfloat16),
                            preferred_element_type=jnp.float32)

    @pl.when(pl.program_id(2) == pl.num_programs(2) - 1)
    def _():
        o_ref[...] = (acc_ref[...] + b_ref[...] + r_ref[...]).astype(o_ref.dtype)


def pallas_linear_residual(y2d, w, bias, res2d, tm_pref=256, tn_pref=256,
                           tk_pref=512):
    M, K = y2d.shape
    K2, N = w.shape
    assert K == K2
    tm = _pick_tile(M, tm_pref, 8)
    tn = _pick_tile(N, tn_pref, 128)
    tk = _pick_tile(K, tk_pref, 128)
    assert M % tm == 0 and N % tn == 0 and K % tk == 0
    return pl.pallas_call(
        linear_residual_kernel,
        out_shape=jax.ShapeDtypeStruct((M, N), y2d.dtype),
        grid=(M // tm, N // tn, K // tk),
        in_specs=[pl.BlockSpec((tm, tk), lambda i, j, k: (i, k)),
                  pl.BlockSpec((tk, tn), lambda i, j, k: (k, j)),
                  pl.BlockSpec((1, tn), lambda i, j, k: (0, j)),
                  pl.BlockSpec((tm, tn), lambda i, j, k: (i, j))],
        out_specs=pl.BlockSpec((tm, tn), lambda i, j, k: (i, j)),
        scratch_shapes=[pltpu.VMEM((tm, tn), jnp.float32)],
        compiler_params=_compiler_params(("parallel", "parallel", "arbitrary")),
    )(y2d, w, bias.reshape(1, N), res2d)


def flash_attn_kernel(q_ref, k_ref, v_ref, o_ref, m_ref, l_ref, acc_ref, *,
                      num_heads, causal, scale, tq, tk):
    """Flash-style attention: online softmax over Tk blocks, all heads per step.

    q_ref: (1, tq, E); k_ref/v_ref: (1, tk, E); o_ref: (1, tq, E).
    Scratch: m/l (H, tq, 1), acc (H, tq, hd), all fp32.
    """
    qi = pl.program_id(1)
    ki = pl.program_id(2)

    @pl.when(ki == 0)
    def _():
        m_ref[...] = jnp.full_like(m_ref, NEG_INF)
        l_ref[...] = jnp.zeros_like(l_ref)
        acc_ref[...] = jnp.zeros_like(acc_ref)

    def compute():
        q = q_ref[0].astype(jnp.float32) * scale   # fold 1/sqrt(hd) into q once
        k = k_ref[0]
        v = v_ref[0]
        E = q.shape[-1]
        hd = E // num_heads

        if causal:  # per-tile iota mask (cheap), shared by all heads
            row = qi * tq + jax.lax.broadcasted_iota(jnp.int32, (tq, tk), 0)
            col = ki * tk + jax.lax.broadcasted_iota(jnp.int32, (tq, tk), 1)
            keep = row >= col

        for h in range(num_heads):
            qh = q[:, h * hd:(h + 1) * hd].astype(jnp.bfloat16)
            kh = k[:, h * hd:(h + 1) * hd].astype(jnp.bfloat16)
            vh = v[:, h * hd:(h + 1) * hd].astype(jnp.bfloat16)
            # NT matmul: contract last dims directly, no kh.T transpose.
            s = jax.lax.dot_general(qh, kh, (((1,), (1,)), ((), ())),
                                    preferred_element_type=jnp.float32)
            if causal:
                s = jnp.where(keep, s, NEG_INF)
            m_prev = m_ref[h]                                   # (tq, 1)
            m_new = jnp.maximum(m_prev, jnp.max(s, axis=-1, keepdims=True))
            alpha = jnp.exp(m_prev - m_new)
            p = jnp.exp(s - m_new)                              # (tq, tk) fp32
            l_ref[h] = alpha * l_ref[h] + jnp.sum(p, axis=-1, keepdims=True)
            acc_ref[h] = alpha * acc_ref[h] + jnp.dot(
                p.astype(jnp.bfloat16), vh, preferred_element_type=jnp.float32)
            m_ref[h] = m_new

    if causal:
        # Skip k-blocks that lie entirely in the future of every q row in this tile.
        pl.when(ki * tk < (qi + 1) * tq)(compute)
    else:
        compute()

    @pl.when(ki == pl.num_programs(2) - 1)
    def _():
        E = o_ref.shape[-1]
        hd = E // num_heads
        for h in range(num_heads):  # per-head direct stores (no concatenate)
            o_ref[0, :, h * hd:(h + 1) * hd] = (
                acc_ref[h] * pl.reciprocal(l_ref[h], approx=True)
            ).astype(o_ref.dtype)


def pallas_flash_attention(q_arr, kv_arr, *, num_heads, embed_dim, causal,
                           q_block, k_block, v_block, tq_pref=256, tk_pref=512):
    """q_arr: (B, Tq, nq*E) with q at column-block `q_block` (block size E);
    kv_arr: (B, Tk, nk*E) with k/v at column-blocks `k_block`/`v_block`."""
    B, Tq, _ = q_arr.shape
    _, Tk, _ = kv_arr.shape
    E = embed_dim
    assert E % num_heads == 0
    hd = E // num_heads
    scale = 1.0 / float(np.sqrt(hd))

    tq = _pick_tile(Tq, tq_pref, 8)
    tk = _pick_tile(Tk, tk_pref, 8)
    assert Tq % tq == 0 and Tk % tk == 0

    kern = functools.partial(flash_attn_kernel, num_heads=num_heads,
                             causal=causal, scale=scale, tq=tq, tk=tk)
    return pl.pallas_call(
        kern,
        out_shape=jax.ShapeDtypeStruct((B, Tq, E), q_arr.dtype),
        grid=(B, Tq // tq, Tk // tk),
        in_specs=[
            pl.BlockSpec((1, tq, E), lambda b, qi, ki: (b, qi, q_block)),
            pl.BlockSpec((1, tk, E), lambda b, qi, ki: (b, ki, k_block)),
            pl.BlockSpec((1, tk, E), lambda b, qi, ki: (b, ki, v_block)),
        ],
        out_specs=pl.BlockSpec((1, tq, E), lambda b, qi, ki: (b, qi, 0)),
        scratch_shapes=[pltpu.VMEM((num_heads, tq, 1), jnp.float32),
                        pltpu.VMEM((num_heads, tq, 1), jnp.float32),
                        pltpu.VMEM((num_heads, tq, hd), jnp.float32)],
        compiler_params=_compiler_params(("parallel", "parallel", "arbitrary")),
    )(q_arr, kv_arr, kv_arr)


# ------------------------------ parameters --------------------------------- #

def init_params(key, E, num_heads, mlp_factor, cross_E):
    ks = jax.random.split(key, 20)

    def w(k, shape, scale=0.02):
        return (scale * jax.random.normal(k, shape)).astype(jnp.float32)

    H = mlp_factor * E
    p = {
        # layer norms
        "ln_qkv_g": 1.0 + w(ks[0], (E,), 0.1), "ln_qkv_b": w(ks[1], (E,), 0.1),
        "ln_q_g":   1.0 + w(ks[2], (E,), 0.1), "ln_q_b":   w(ks[3], (E,), 0.1),
        "ln_kv_g":  1.0 + w(ks[4], (cross_E,), 0.1), "ln_kv_b": w(ks[5], (cross_E,), 0.1),
        "ln_mlp_g": 1.0 + w(ks[6], (E,), 0.1), "ln_mlp_b": w(ks[7], (E,), 0.1),
        # causal self attention (c_attn: E -> 3E, c_proj: E -> E)
        "c_attn_w": w(ks[8], (E, 3 * E)), "c_attn_b": w(ks[9], (3 * E,)),
        "c_proj_w": w(ks[10], (E, E)),    "c_proj_b": w(ks[11], (E,)),
        # cross attention (nn.MultiheadAttention with kdim=vdim=cross_E)
        "xq_w": w(ks[12], (E, E)),
        "xkv_w": w(ks[13], (cross_E, 2 * E)),   # [k_proj | v_proj] concatenated
        "x_in_b": w(ks[15], (3 * E,)),
        "x_out_w": w(ks[16], (E, E)), "x_out_b": w(ks[17], (E,)),
        # MLP
        "mlp_w1": w(ks[18], (E, H)), "mlp_b1": jnp.zeros((H,), jnp.float32),
        "mlp_w2": w(ks[19], (H, E)), "mlp_b2": jnp.zeros((E,), jnp.float32),
    }
    return p


# ------------------------------ forward pass -------------------------------- #

def transformer_layer_forward(params, embeddings, cross_embeddings=None, num_heads=4):
    B, T, E = embeddings.shape
    M = B * T
    x2 = embeddings.reshape(M, E)

    # ---- causal self attention: fused LN + QKV projection (lane-dense (M,3E)) ----
    qkv = pallas_ln_linear(x2, params["ln_qkv_g"], params["ln_qkv_b"],
                           params["c_attn_w"], params["c_attn_b"])
    qkv3 = qkv.reshape(B, T, 3 * E)
    y = pallas_flash_attention(qkv3, qkv3, num_heads=num_heads, embed_dim=E,
                               causal=True, q_block=0, k_block=1, v_block=2)
    # fused c_proj + residual add
    x2 = pallas_linear_residual(y.reshape(M, E), params["c_proj_w"],
                                params["c_proj_b"], x2)

    # ---- cross attention (nn.MultiheadAttention, eval) ----
    if cross_embeddings is not None:
        Bc, S, Ec = cross_embeddings.shape
        c2 = cross_embeddings.reshape(Bc * S, Ec)
        bq = params["x_in_b"][:E]
        bkv = params["x_in_b"][E:]
        xq = pallas_ln_linear(x2, params["ln_q_g"], params["ln_q_b"],
                              params["xq_w"], bq)
        xkv = pallas_ln_linear(c2, params["ln_kv_g"], params["ln_kv_b"],
                               params["xkv_w"], bkv)
        y = pallas_flash_attention(xq.reshape(B, T, E), xkv.reshape(B, S, 2 * E),
                                   num_heads=num_heads, embed_dim=E,
                                   causal=False, q_block=0, k_block=0, v_block=1)
        # fused out_proj + residual add
        x2 = pallas_linear_residual(y.reshape(M, E), params["x_out_w"],
                                    params["x_out_b"], x2)

    # ---- MLP: fused LN + up-proj + GELU, then fused down-proj + residual add ----
    h = pallas_ln_linear(x2, params["ln_mlp_g"], params["ln_mlp_b"],
                         params["mlp_w1"], params["mlp_b1"], activation="gelu")
    x2 = pallas_linear_residual(h, params["mlp_w2"], params["mlp_b2"], x2)

    return x2.reshape(B, T, E)


# ----------------------- pure-JAX reference (for check) --------------------- #

def reference_forward(params, embeddings, cross_embeddings, num_heads):
    B, T, E = embeddings.shape
    hd = E // num_heads

    def ln(x, g, b):
        mu = jnp.mean(x, -1, keepdims=True)
        var = jnp.mean((x - mu) ** 2, -1, keepdims=True)
        return (x - mu) / jnp.sqrt(var + EPS) * g + b

    def heads(t):
        return t.reshape(t.shape[0], t.shape[1], num_heads, hd).transpose(0, 2, 1, 3)

    def sdpa(q, k, v, causal):
        s = jnp.einsum("bhqd,bhkd->bhqk", q, k) / jnp.sqrt(jnp.float32(hd))
        if causal:
            m = jnp.tril(jnp.ones((s.shape[-2], s.shape[-1]), bool))
            s = jnp.where(m, s, jnp.finfo(s.dtype).min)
        p = jax.nn.softmax(s, axis=-1)
        return jnp.einsum("bhqk,bhkd->bhqd", p, v)

    x = embeddings
    h_ = ln(x, params["ln_qkv_g"], params["ln_qkv_b"])
    qkv = h_ @ params["c_attn_w"] + params["c_attn_b"]
    q, k, v = jnp.split(qkv, 3, axis=-1)
    y = sdpa(heads(q), heads(k), heads(v), True).transpose(0, 2, 1, 3).reshape(B, T, E)
    x = x + (y @ params["c_proj_w"] + params["c_proj_b"])

    if cross_embeddings is not None:
        qn = ln(x, params["ln_q_g"], params["ln_q_b"])
        kvn = ln(cross_embeddings, params["ln_kv_g"], params["ln_kv_b"])
        bq, bk, bv = (params["x_in_b"][:E], params["x_in_b"][E:2 * E],
                      params["x_in_b"][2 * E:])
        xk_w = params["xkv_w"][:, :E]
        xv_w = params["xkv_w"][:, E:]
        xq = qn @ params["xq_w"] + bq
        xk = kvn @ xk_w + bk
        xv = kvn @ xv_w + bv
        y = sdpa(heads(xq), heads(xk), heads(xv), False)
        y = y.transpose(0, 2, 1, 3).reshape(B, T, E)
        x = x + (y @ params["x_out_w"] + params["x_out_b"])

    m = ln(x, params["ln_mlp_g"], params["ln_mlp_b"])
    h1 = m @ params["mlp_w1"] + params["mlp_b1"]
    h1 = 0.5 * h1 * (1.0 + jax.lax.erf(h1 * INV_SQRT2))
    x = x + (h1 @ params["mlp_w2"] + params["mlp_b2"])
    return x


# ---------------------------------- main ------------------------------------ #

if __name__ == "__main__":
    B, T, S, E, NH, MLP_FACTOR = 2, 8, 8, 32, 4, 4

    key = jax.random.PRNGKey(0)
    k_emb, k_cross, k_par = jax.random.split(key, 3)
    embeddings = jax.random.normal(k_emb, (B, T, E), jnp.float32)
    cross_embeddings = jax.random.normal(k_cross, (B, S, E), jnp.float32)
    params = init_params(k_par, E, NH, MLP_FACTOR, cross_E=E)

    out = transformer_layer_forward(params, embeddings, cross_embeddings, num_heads=NH)
    out = jax.block_until_ready(out)

    assert out.shape == (B, T, E)
    assert bool(jnp.all(jnp.isfinite(out)))

    ref = jax.block_until_ready(reference_forward(params, embeddings, cross_embeddings, NH))
    np.testing.assert_allclose(np.asarray(out), np.asarray(ref), rtol=2e-2, atol=2e-2)

    print("KERNEL_OK")
</pallas_src>

<mosaic_0001>
module attributes {stable_mosaic.version = 11 : i64} {
  func.func @ln_linear_kernel(%arg0: i32, %arg1: i32, %arg2: memref<16x32xf32, #tpu.memory_space<vmem>>, %arg3: memref<1x32xf32, #tpu.memory_space<vmem>>, %arg4: memref<1x32xf32, #tpu.memory_space<vmem>>, %arg5: memref<32x96xf32, #tpu.memory_space<vmem>>, %arg6: memref<1x96xf32, #tpu.memory_space<vmem>>, %arg7: memref<16x96xf32, #tpu.memory_space<vmem>>, %arg8: memref<16x32xbf16, #tpu.memory_space<vmem>>) attributes {dimension_semantics = [#tpu.dimension_semantics<parallel>, #tpu.dimension_semantics<arbitrary>], iteration_bounds = array<i64: 1, 1>, scalar_prefetch = 0 : i64, scratch_operands = 1 : i64, tpu.core_type = #tpu.core_type<tc>, window_params = [{transform_indices = @transform_0, window_bounds = array<i64: 16, 32>}, {pipeline_mode = #tpu.pipeline_mode<synchronous>, transform_indices = @transform_1, window_bounds = array<i64: 1, 32>}, {pipeline_mode = #tpu.pipeline_mode<synchronous>, transform_indices = @transform_2, window_bounds = array<i64: 1, 32>}, {transform_indices = @transform_3, window_bounds = array<i64: 32, 96>}, {transform_indices = @transform_4, window_bounds = array<i64: 1, 96>}, {transform_indices = @transform_5, window_bounds = array<i64: 16, 96>}]} {
    %c0_i32 = arith.constant 0 : i32
    %0 = arith.cmpi eq, %arg1, %c0_i32 : i32
    %1 = arith.extui %0 : i1 to i32
    %c0_i32_0 = arith.constant 0 : i32
    %2 = arith.cmpi ne, %1, %c0_i32_0 : i32
    scf.if %2 {
      %c0_8 = arith.constant 0 : index
      %c0_9 = arith.constant 0 : index
      %11 = vector.load %arg2[%c0_8, %c0_9] : memref<16x32xf32, #tpu.memory_space<vmem>>, vector<16x32xf32>
      %cst_10 = arith.constant dense<0.000000e+00> : vector<16xf32>
      %12 = vector.multi_reduction <add>, %11, %cst_10 [1] : vector<16x32xf32> to vector<16xf32>
      %13 = vector.shape_cast %12 : vector<16xf32> to vector<16x1xf32>
      %cst_11 = arith.constant 3.200000e+01 : f32
      %14 = vector.broadcast %cst_11 : f32 to vector<16x1xf32>
      %15 = arith.divf %13, %14 : vector<16x1xf32>
      %16 = vector.broadcast %15 : vector<16x1xf32> to vector<16x32xf32>
      %17 = arith.subf %11, %16 : vector<16x32xf32>
      %18 = arith.mulf %17, %17 : vector<16x32xf32>
      %cst_12 = arith.constant dense<0.000000e+00> : vector<16xf32>
      %19 = vector.multi_reduction <add>, %18, %cst_12 [1] : vector<16x32xf32> to vector<16xf32>
      %20 = vector.shape_cast %19 : vector<16xf32> to vector<16x1xf32>
      %cst_13 = arith.constant 3.200000e+01 : f32
      %21 = vector.broadcast %cst_13 : f32 to vector<16x1xf32>
      %22 = arith.divf %20, %21 : vector<16x1xf32>
      %23 = vector.broadcast %15 : vector<16x1xf32> to vector<16x32xf32>
      %24 = arith.subf %11, %23 : vector<16x32xf32>
      %cst_14 = arith.constant 9.99999974E-6 : f32
      %25 = vector.broadcast %cst_14 : f32 to vector<16x1xf32>
      %26 = arith.addf %22, %25 : vector<16x1xf32>
      %27 = math.rsqrt %26 : vector<16x1xf32>
      %28 = vector.broadcast %27 : vector<16x1xf32> to vector<16x32xf32>
      %29 = arith.mulf %24, %28 : vector<16x32xf32>
      %c0_15 = arith.constant 0 : index
      %c0_16 = arith.constant 0 : index
      %30 = vector.load %arg3[%c0_15, %c0_16] : memref<1x32xf32, #tpu.memory_space<vmem>>, vector<1x32xf32>
      %31 = vector.broadcast %30 : vector<1x32xf32> to vector<16x32xf32>
      %32 = arith.mulf %29, %31 : vector<16x32xf32>
      %c0_17 = arith.constant 0 : index
      %c0_18 = arith.constant 0 : index
      %33 = vector.load %arg4[%c0_17, %c0_18] : memref<1x32xf32, #tpu.memory_space<vmem>>, vector<1x32xf32>
      %34 = vector.broadcast %33 : vector<1x32xf32> to vector<16x32xf32>
      %35 = arith.addf %32, %34 : vector<16x32xf32>
      %36 = arith.truncf %35 : vector<16x32xf32> to vector<16x32xbf16>
      %c0_19 = arith.constant 0 : index
      %c0_20 = arith.constant 0 : index
      %37 = vector.load %arg8[%c0_19, %c0_20] : memref<16x32xbf16, #tpu.memory_space<vmem>>, vector<16x32xbf16>
      tpu.vector_store %arg8[%c0_19, %c0_20], %36 {strides = array<i32>} : memref<16x32xbf16, #tpu.memory_space<vmem>>, vector<16x32xbf16>,
    } else {
    }
    %c0 = arith.constant 0 : index
    %c0_1 = arith.constant 0 : index
    %3 = vector.load %arg8[%c0, %c0_1] : memref<16x32xbf16, #tpu.memory_space<vmem>>, vector<16x32xbf16>
    %c0_2 = arith.constant 0 : index
    %c0_3 = arith.constant 0 : index
    %4 = vector.load %arg5[%c0_2, %c0_3] : memref<32x96xf32, #tpu.memory_space<vmem>>, vector<32x96xf32>
    %5 = arith.truncf %4 : vector<32x96xf32> to vector<32x96xbf16>
    %cst = arith.constant dense<0.000000e+00> : vector<16x96xf32>
    %6 = tpu.matmul %3, %5, %cst {dimension_numbers = #tpu.dot_dimension_numbers<[1], [0], [0], [1], [0, 0, 1, 1], [], []>} : vector<16x32xbf16>, vector<32x96xbf16>, vector<16x96xf32> -> vector<16x96xf32>
    %c0_4 = arith.constant 0 : index
    %c0_5 = arith.constant 0 : index
    %7 = vector.load %arg6[%c0_4, %c0_5] : memref<1x96xf32, #tpu.memory_space<vmem>>, vector<1x96xf32>
    %8 = vector.broadcast %7 : vector<1x96xf32> to vector<16x96xf32>
    %9 = arith.addf %6, %8 : vector<16x96xf32>
    %c0_6 = arith.constant 0 : index
    %c0_7 = arith.constant 0 : index
    %10 = vector.load %arg7[%c0_6, %c0_7] : memref<16x96xf32, #tpu.memory_space<vmem>>, vector<16x96xf32>
    tpu.vector_store %arg7[%c0_6, %c0_7], %9 {strides = array<i32>} : memref<16x96xf32, #tpu.memory_space<vmem>>, vector<16x96xf32>,
    return
  }
  func.func @transform_0(%arg0: i32, %arg1: i32) -> (i32, i32) {
    %c0_i32 = arith.constant 0 : i32
    %c0_i32_0 = arith.constant 0 : i32
    return %arg0, %c0_i32 : i32, i32
  }
  func.func @transform_1(%arg0: i32, %arg1: i32) -> (i32, i32) {
    %c0_i32 = arith.constant 0 : i32
    %c0_i32_0 = arith.constant 0 : i32
    %c0_i32_1 = arith.constant 0 : i32
    return %c0_i32, %c0_i32_0 : i32, i32
  }
  func.func @transform_2(%arg0: i32, %arg1: i32) -> (i32, i32) {
    %c0_i32 = arith.constant 0 : i32
    %c0_i32_0 = arith.constant 0 : i32
    %c0_i32_1 = arith.constant 0 : i32
    return %c0_i32, %c0_i32_0 : i32, i32
  }
  func.func @transform_3(%arg0: i32, %arg1: i32) -> (i32, i32) {
    %c0_i32 = arith.constant 0 : i32
    %c0_i32_0 = arith.constant 0 : i32
    return %c0_i32, %arg1 : i32, i32
  }
  func.func @transform_4(%arg0: i32, %arg1: i32) -> (i32, i32) {
    %c0_i32 = arith.constant 0 : i32
    %c0_i32_0 = arith.constant 0 : i32
    return %c0_i32, %arg1 : i32, i32
  }
  func.func @transform_5(%arg0: i32, %arg1: i32) -> (i32, i32) {
    %c0_i32 = arith.constant 0 : i32
    return %arg0, %arg1 : i32, i32
  }
}

</mosaic_0001>

<llo_original>
// kernel: tpu_custom_call.1
$region0: #{tpu_custom_call.1}
  #allocation0 [shape = 'u32[]', space=smem, size = 0x4, offset = 0x4, fixed_abs, tag = 'smem constant byte address 0x4 - core index']
  #allocation1 [shape = 'u32[72,128]{1,0:T(1,128)}', space=vmem, size = 0x9000, scoped, tag = 'internal scratch']
  #allocation2 [shape = 'bf16[16,32]{1,0:T(8,128)(2,1)}', space=vmem, size = 0x1000, scoped, tag = 'scratch operand']
  %s0 = inlined_call_operand.hbm [shape: f32[16,32], index: 0, kind: input, shape index: {}]
  %s1 = inlined_call_operand.hbm [shape: f32[1,32], index: 1, kind: input, shape index: {}]
  %s2 = inlined_call_operand.vmem [shape: f32[1,32], index: 2, kind: input, shape index: {}]
  %s3 = inlined_call_operand.hbm [shape: f32[32,96], index: 3, kind: input, shape index: {}]
  %s4 = inlined_call_operand.vmem [shape: f32[1,96], index: 4, kind: input, shape index: {}]
  %s5 = inlined_call_operand.hbm [shape: f32[16,96], index: 5, kind: output, shape index: {}]
  %s6 = sld [smem:[#allocation0]]
  $region46: #{tpu_custom_call.1} parent=0
    _
  %s8 = ssub.s32 1, %s6
  %s9 = scalar_select 0, %s8, %s6
  $region1: #{tpu_custom_call.1} parent=0
    #allocation3 [shape = 'u8[8192]{0}', space=vmem, size = 0x2000, scoped, tag = 'input window, operand 0, single buffered']
    #allocation4 [shape = 's32[1]{0}', space=sflag, size = 0x4, scoped, tag = 'scoped memory for tpu_custom_call.1']
    #allocation5 [shape = 's32[1]{0}', space=sflag, size = 0x4, scoped, tag = 'scoped memory for tpu_custom_call.1']
    #allocation6 [shape = 'u8[512]{0}', space=vmem, size = 0x400, scoped, tag = 'input window, operand 1, single buffered']
    #allocation7 [shape = 's32[1]{0}', space=sflag, size = 0x4, scoped, tag = 'scoped memory for tpu_custom_call.1']
    #allocation8 [shape = 'u8[16384]{0}', space=vmem, size = 0x4000, scoped, tag = 'input window, operand 3, single buffered']
    #allocation9 [shape = 'u8[8192]{0}', space=vmem, size = 0x2000, scoped, tag = 'output window, operand 0, single buffered']
    %10 = vsyncpa [#allocation4], 0
    %11 = vsyncpa [#allocation7], 0
    %12 = vsyncpa [#allocation5], 0
    // Predicated region
    $region2: #{tpu_custom_call.1} parent=1 // pred_check
      _
    $region3: #{tpu_custom_call.1} parent=1 // pred_check_branch
      %14 = sbr.rel (0) target = $region5
    $region4: #{tpu_custom_call.1} parent=1 // pred_region
      %16 = vsyncadd [#allocation4], 0
      %s17 = sshll.u32 %s0, 4
      %s18 = int_to_ptr.hbm [resolvable:$true] %s17
      %s19 = sshll.u32 [#allocation3], 4
      %s20 = int_to_ptr.vmem [resolvable:$true] %s19
      %25 = dma.hbm_to_vmem [thread:$0]  %s18, 256, %s20, [#allocation4], 128, 128, 8
    $region5: #{tpu_custom_call.1} parent=1 // pred_fallthru
      _
    // Predicated region
    $region6: #{tpu_custom_call.1} parent=1 // pred_check
      _
    $region7: #{tpu_custom_call.1} parent=1 // pred_check_branch
      %27 = sbr.rel (0) target = $region9
    $region8: #{tpu_custom_call.1} parent=1 // pred_region
      %29 = vsyncadd [#allocation7], 0
      %s31 = sshll.u32 %s1, 4
      %s32 = int_to_ptr.hbm [resolvable:$true] %s31
      %s33 = sshll.u32 [#allocation6], 4
      %s34 = int_to_ptr.vmem [resolvable:$true] %s33
      %36 = dma.hbm_to_vmem [thread:$0]  %s32, 16, %s34, [#allocation7]
    $region9: #{tpu_custom_call.1} parent=1 // pred_fallthru
      _
    // Predicated region
    $region10: #{tpu_custom_call.1} parent=1 // pred_check
      _
    $region11: #{tpu_custom_call.1} parent=1 // pred_check_branch
      %38 = sbr.rel (0) target = $region13
    $region12: #{tpu_custom_call.1} parent=1 // pred_region
      _
    $region13: #{tpu_custom_call.1} parent=1 // pred_fallthru
      _
    // Predicated region
    $region14: #{tpu_custom_call.1} parent=1 // pred_check
      _
    $region15: #{tpu_custom_call.1} parent=1 // pred_check_branch
      %40 = sbr.rel (0) target = $region17
    $region16: #{tpu_custom_call.1} parent=1 // pred_region
      %42 = vsyncadd [#allocation7], 0
      %s43 = sshll.u32 %s3, 4
      %s44 = int_to_ptr.hbm [resolvable:$true] %s43
      %s45 = sshll.u32 [#allocation8], 4
      %s46 = int_to_ptr.vmem [resolvable:$true] %s45
      %51 = dma.hbm_to_vmem [thread:$0]  %s44, 512, %s46, [#allocation7], 128, 128, 8
    $region17: #{tpu_custom_call.1} parent=1 // pred_fallthru
      _
    // Predicated region
    $region18: #{tpu_custom_call.1} parent=1 // pred_check
      _
    $region19: #{tpu_custom_call.1} parent=1 // pred_check_branch
      %53 = sbr.rel (0) target = $region21
    $region20: #{tpu_custom_call.1} parent=1 // pred_region
      _
    $region21: #{tpu_custom_call.1} parent=1 // pred_fallthru
      _
    // Predicated region
    $region22: #{tpu_custom_call.1} parent=1 // pred_check
      _
    $region23: #{tpu_custom_call.1} parent=1 // pred_check_branch
      %55 = sbr.rel (0) target = $region25
    $region24: #{tpu_custom_call.1} parent=1 // pred_region
      %57 = dma.done [#allocation4], 256
    $region25: #{tpu_custom_call.1} parent=1 // pred_fallthru
      _
    // Predicated region
    $region26: #{tpu_custom_call.1} parent=1 // pred_check
      _
    $region27: #{tpu_custom_call.1} parent=1 // pred_check_branch
      %59 = sbr.rel (0) target = $region29
    $region28: #{tpu_custom_call.1} parent=1 // pred_region
      %61 = dma.done [#allocation7], 16
    $region29: #{tpu_custom_call.1} parent=1 // pred_fallthru
      _
    // Predicated region
    $region30: #{tpu_custom_call.1} parent=1 // pred_check
      _
    $region31: #{tpu_custom_call.1} parent=1 // pred_check_branch
      %63 = sbr.rel (0) target = $region33
    $region32: #{tpu_custom_call.1} parent=1 // pred_region
      %65 = dma.done [#allocation7], 512
    $region33: #{tpu_custom_call.1} parent=1 // pred_fallthru
      _
    %p67 = scmp.eq.s32.totalorder 0, 0
    // Predicated region
    $region34: #{tpu_custom_call.1} parent=1 // pred_check
      %p68 = pneg %p67
    $region35: #{tpu_custom_call.1} parent=1 // pred_check_branch
      %70 = sbr.rel (%p68) target = $region37
    $region36: #{tpu_custom_call.1} parent=1 // pred_region
      %v71 = vld [vmem:[#allocation3] sm:$0xff]
      %v72 = vld [vmem:[#allocation3 + $0x8] sm:$0xff]
      %vm73 = vcmask 261120
      %v74 = vsel %vm73, %v71, 0.0
      %75 = vadd.xlane.f32.xlu0 %v74
      %v76 = vpop.xlane.xlu0 %75
      %v77 = vsel %vm73, %v72, 0.0
      %78 = vadd.xlane.f32.xlu0 %v77
      %v79 = vpop.xlane.xlu0 %78
      %v80 = vrcp.pop 32.0
      %v81 = vmul.f32 32.0, %v80
      %v82 = vsub.f32 1.0, %v81
      %v83 = vmul.f32 %v80, %v82
      %v84 = vadd.f32 %v80, %v83
      %vm85 = vweird.f32 %v80
      %v86 = vsel %vm85, %v80, %v84
      %v87 = vmul.f32 %v76, %v86
      %v88 = vmul.f32 %v79, %v86
      %v89 = vsub.f32 %v71, %v87
      %v90 = vsub.f32 %v72, %v88
      %v91 = vmul.f32 %v89, %v89
      %v92 = vmul.f32 %v90, %v90
      %v93 = vsel %vm73, %v91, 0.0
      %94 = vadd.xlane.f32.xlu0 %v93
      %v95 = vpop.xlane.xlu0 %94
      %v96 = vsel %vm73, %v92, 0.0
      %97 = vadd.xlane.f32.xlu0 %v96
      %v98 = vpop.xlane.xlu0 %97
      %v99 = vmul.f32 %v95, %v86
      %v100 = vmul.f32 %v98, %v86
      %v101 = vadd.f32 %v99, 1e-05
      %v102 = vadd.f32 %v100, 1e-05
      %v103 = vrsqrt.pop %v101
      %v104 = vmul.f32 %v103, %v101
      %v105 = vmul.f32 %v104, %v103
      %v106 = vmul.f32 0.5, %v105
      %v107 = vsub.f32 1.5, %v106
      %v108 = vmul.f32 %v103, %v107
      %vm109 = vweird.f32 %v101
      %vm110 = vweird.f32 %v103
      %vm111 = vmor %vm109, %vm110
      %v112 = vsel %vm111, %v103, %v108
      %v113 = vrsqrt.pop %v102
      %v114 = vmul.f32 %v113, %v102
      %v115 = vmul.f32 %v114, %v113
      %v116 = vmul.f32 0.5, %v115
      %v117 = vsub.f32 1.5, %v116
      %v118 = vmul.f32 %v113, %v117
      %vm119 = vweird.f32 %v102
      %vm120 = vweird.f32 %v113
      %vm121 = vmor %vm119, %vm120
      %v122 = vsel %vm121, %v113, %v118
      %v123 = vmul.f32 %v89, %v112
      %v124 = vmul.f32 %v90, %v122
      %v125 = vld [vmem:[#allocation6] sm:$0x1]
      %v127 = vperm.slane %v125, 0
      %v129 = vmul.f32 %v123, %v127
      %v130 = vmul.f32 %v124, %v127
      %v131 = vld [vmem:[%s2] sm:$0x1]
      %v133 = vperm.slane %v131, 0
      %v135 = vadd.f32 %v129, %v133
      %v136 = vadd.f32 %v130, %v133
      %v137 = vpack.c.bf16 %v135, %v135
      %v138 = vpack.c.bf16 %v136, %v136
      %vm139 = vcmask 257024
      %140 = vst.msk [vmem:[#allocation2] sm:$0xf] %vm139, %v137
      %141 = vst.msk [vmem:[#allocation2 + $0x4] sm:$0xf] %vm139, %v138
    $region37: #{tpu_custom_call.1} parent=1 // pred_fallthru
      _
    %v142 = vld [vmem:[#allocation2] sm:$0xf]
    %v143 = vld [vmem:[#allocation2 + $0x4] sm:$0xf]
    %v144 = vld [vmem:[#allocation8] sm:$0xff]
    %v145 = vld [vmem:[#allocation8 + $0x8] sm:$0xff]
    %v146 = vld [vmem:[#allocation8 + $0x10] sm:$0xff]
    %v147 = vld [vmem:[#allocation8 + $0x18] sm:$0xff]
    %v148 = vpack.c.bf16 %v145, %v144
    %v149 = vpack.c.bf16 %v147, %v146
    %v150 = vld [vmem:[%s4] sm:$0x1]
    %v152 = vperm.slane %v150, 0
    %v156 = vunpack.c.l.b16 %v142
    %v157 = vunpack.c.l.b16 %v143
    %v158 = vpack.c.b16 %v157, %v156
    %vm159 = vcmask 261120
    %v161 = vsel %vm159, %v158, 0
    %163 = vmatpush.bf16.msra.mxu0 0
    %164 = vmatpush.bf16.msra.mxu0 0
    %165 = vmatpush.bf16.msra.mxu0 0
    %166 = vmatpush.bf16.msra.mxu0 0
    %167 = vmatpush.bf16.msra.mxu0 0
    %168 = vmatpush.bf16.msra.mxu0 0
    %169 = vmatpush.bf16.msra.mxu0 %v149
    %170 = vmatpush.bf16.msra.mxu0 %v148
    %171 = vmatmul.bf16.gmra.mxu0 %v161
    %v172 = vpop.f32.mrf.mxu0
    %v173 = vadd.f32 %v152, %v172
    %v174 = vpop.f32.mrf.mxu0
    %v175 = vadd.f32 %v152, %v174
    %176 = vdwg.mxu0
    %vm177 = vcmask 785408
    %178 = vst.msk [vmem:[#allocation9] sm:$0xff] %vm177, %v173
    %179 = vst.msk [vmem:[#allocation9 + $0x8] sm:$0xff] %vm177, %v175
    // Predicated region
    $region38: #{tpu_custom_call.1} parent=1 // pred_check
      _
    $region39: #{tpu_custom_call.1} parent=1 // pred_check_branch
      %181 = sbr.rel (0) target = $region41
    $region40: #{tpu_custom_call.1} parent=1 // pred_region
      %183 = vsyncadd [#allocation5], 0
      %s184 = sshll.u32 [#allocation9], 4
      %s185 = int_to_ptr.vmem [resolvable:$true] %s184
      %s186 = sshll.u32 %s5, 4
      %s187 = int_to_ptr.hbm [resolvable:$true] %s186
      %192 = dma.vmem_to_hbm [thread:$0]  %s185, 256, %s187, [#allocation5], 128, 128, 8
    $region41: #{tpu_custom_call.1} parent=1 // pred_fallthru
      _
    // Predicated region
    $region42: #{tpu_custom_call.1} parent=1 // pred_check
      _
    $region43: #{tpu_custom_call.1} parent=1 // pred_check_branch
      %194 = sbr.rel (0) target = $region45
    $region44: #{tpu_custom_call.1} parent=1 // pred_region
      %196 = dma.done [#allocation5], 256
    $region45: #{tpu_custom_call.1} parent=1 // pred_fallthru
      _
    %197 = vsyncpa [#allocation4], 1
    %198 = vsyncpa [#allocation7], 1
    %199 = vsyncpa [#allocation5], 1

</llo_original>
